<compile_context>
chip_gen: v7x
topology: tpu7x:2x2x1
jax: 0.10.0
libtpu: 0.0.40
codegen_flags: <defaults>
</compile_context>

<pallas_src>
import jax
import jax.numpy as jnp
import numpy as np
from jax import lax
from jax.experimental import pallas as pl
from jax.experimental.pallas import tpu as pltpu

LINEAR_IN = 10
LINEAR_OUT = 2560
LANE = 128
NQ = LINEAR_OUT // LANE          # 20 sublane-groups of 128 lanes
MAX_TILE = 8192                  # lane width of one grid step (multiple of 128)


def _interp_kernel(htab_ref, q_ref, r_ref, w0_ref, w1_ref, out_ref):
    # htab_ref: (40, 128) f32  rows 0..19 = h.reshape(20,128),
    #                          rows 20..39 = h_shift.reshape(20,128)
    # q_ref   : (1, TN)  int32  i0 // 128 per output position
    # r_ref   : (1, TN)  int32  i0 %  128 per output position
    # w0_ref  : (1, TN)  f32    lerp weight of tap i0   (0 on padded tail)
    # w1_ref  : (1, TN)  f32    lerp weight of tap i1   (0 on padded tail)
    # out_ref : (1, TN)  f32    single output row (batch broadcast in wrapper)
    tn = q_ref.shape[-1]

    # ---- r-level gather: K=128 one-hot contraction on the MXU ---------------
    oh_r = (lax.broadcasted_iota(jnp.int32, (LANE, tn), 0)
            == r_ref[...]).astype(jnp.float32)                       # (128, TN)
    taps = jnp.dot(htab_ref[...], oh_r,
                   preferred_element_type=jnp.float32)               # (40, TN)
    # taps[a, j]      = h[a*128 + r[j]]                 for a in [0, 20)
    # taps[a + 20, j] = h[min(a*128 + r[j] + 1, 2559)]  for a in [0, 20)

    # ---- q-select with the lerp weights folded into the mask ----------------
    row_idx = lax.broadcasted_iota(jnp.int32, (2 * NQ, tn), 0)        # (40, TN)
    m = (jnp.where(row_idx == q_ref[...], w0_ref[...], 0.0)
         + jnp.where(row_idx == q_ref[...] + NQ, w1_ref[...], 0.0))   # (40, TN)
    out_ref[...] = jnp.sum(m * taps, axis=0, keepdims=True)           # (1, TN)


def _pick_tile(out_size):
    """Lane-dense tile width; single grid step whenever it fits."""
    padded = pl.cdiv(out_size, LANE) * LANE
    return min(padded, MAX_TILE)


def _interp_tables(in_size, out_size, table_len):
    """PyTorch F.interpolate(mode='linear', align_corners=False) tables.

    Returns (q, r, w0, w1) of shape (1, table_len) with i0 = 128*q + r and the
    second tap i1 = min(i0 + 1, in_size - 1) realized by the shifted h copy in
    htab.  Tail positions (j >= out_size) get zero weights and index 0, so they
    only ever produce masked-out writes of zeros.  Built once with numpy."""
    j = np.arange(table_len, dtype=np.float64)
    scale = in_size / out_size
    src = np.maximum((j + 0.5) * scale - 0.5, 0.0)      # PyTorch clamps negatives
    i0 = np.minimum(np.floor(src), in_size - 1).astype(np.int64)
    w1 = src - i0
    w0 = 1.0 - w1
    valid = j < out_size
    w0 = np.where(valid, w0, 0.0).astype(np.float32)
    w1 = np.where(valid, w1, 0.0).astype(np.float32)
    i0 = np.where(valid, i0, 0)
    q = (i0 // LANE).astype(np.int32)
    r = (i0 % LANE).astype(np.int32)
    return (jnp.asarray(q[None, :]), jnp.asarray(r[None, :]),
            jnp.asarray(w0[None, :]), jnp.asarray(w1[None, :]))


def init_params(key):
    kw, kb = jax.random.split(key)
    # torch Linear weight is (out, in); stored transposed (in, out).
    bound = 1.0 / (LINEAR_IN ** 0.5)
    w = jax.random.uniform(kw, (LINEAR_IN, LINEAR_OUT), jnp.float32, -bound, bound)
    b = jax.random.uniform(kb, (1, LINEAR_OUT), jnp.float32, -bound, bound)
    return {"w": w, "b": b}


def synthesizer_trn_forward(params, text, text_lengths, spec, spec_lengths,
                            wav, wav_lengths):
    B, C, T = spec.shape
    out_size = C * T
    tn = _pick_tile(out_size)
    grid_n = pl.cdiv(out_size, tn)
    table_len = grid_n * tn

    # dummy_input is all-zeros by construction, so the Linear output equals its
    # bias; the (B,10)@(10,2560) matmul (params["w"]) is dead compute and is
    # dropped from the hot path.
    h = params["b"].reshape(LINEAR_OUT)                       # (2560,)
    h_shift = jnp.concatenate([h[1:], h[-1:]])                # h[min(k+1, 2559)]
    htab = jnp.concatenate([h.reshape(NQ, LANE),
                            h_shift.reshape(NQ, LANE)], axis=0)   # (40, 128)

    q, r, w0, w1 = _interp_tables(LINEAR_OUT, out_size, table_len)

    # True (tiny) cost so XLA's scheduler doesn't over-serialize around us.
    cost = pl.CostEstimate(
        flops=2 * (2 * NQ) * LANE * table_len + 10 * (2 * NQ) * table_len,
        transcendentals=0,
        bytes_accessed=(2 * NQ * LANE * 4) + 4 * table_len * 4 + out_size * 4,
    )

    row = pl.pallas_call(
        _interp_kernel,
        out_shape=jax.ShapeDtypeStruct((1, out_size), jnp.float32),
        grid=(grid_n,),
        in_specs=[
            pl.BlockSpec((2 * NQ, LANE), lambda j: (0, 0)),   # htab (resident)
            pl.BlockSpec((1, tn), lambda j: (0, j)),          # q
            pl.BlockSpec((1, tn), lambda j: (0, j)),          # r
            pl.BlockSpec((1, tn), lambda j: (0, j)),          # w0
            pl.BlockSpec((1, tn), lambda j: (0, j)),          # w1
        ],
        out_specs=pl.BlockSpec((1, tn), lambda j: (0, j)),
        compiler_params=pltpu.CompilerParams(
            dimension_semantics=("parallel",)),
        cost_estimate=cost,
    )(htab, q, r, w0, w1)

    # All batch rows are identical (Linear input is zeros): broadcast outside
    # the kernel instead of paying B x the kernel's HBM writes.
    out = jnp.broadcast_to(row.reshape(1, C, T), (B, C, T))
    return (out, None, None, None, None, None)


if __name__ == "__main__":
    key = jax.random.PRNGKey(0)
    k_params, k_text, k_spec, k_wav = jax.random.split(key, 4)

    params = init_params(k_params)

    # Small shapes consistent with the forward signature.
    B, C, T = 2, 4, 16
    n_vocab = 32
    text = jax.random.randint(k_text, (B, 8), 0, n_vocab, dtype=jnp.int32)
    text_lengths = jnp.array([8, 6], dtype=jnp.int32)
    spec = jax.random.normal(k_spec, (B, C, T), dtype=jnp.float32)
    spec_lengths = jnp.array([T, T - 4], dtype=jnp.int32)
    wav = jax.random.normal(k_wav, (B, 1, T * 16), dtype=jnp.float32)
    wav_lengths = jnp.array([T * 16, T * 16], dtype=jnp.int32)

    out, *_ = synthesizer_trn_forward(params, text, text_lengths, spec,
                                      spec_lengths, wav, wav_lengths)
    jax.block_until_ready(out)

    # Reference: the Linear input is zeros, so every batch row equals the
    # linearly interpolated bias (align_corners=False), computed in numpy.
    out_size = C * T
    b_np = np.asarray(params["b"][0], dtype=np.float64)
    j = np.arange(out_size, dtype=np.float64)
    scale = LINEAR_OUT / out_size
    src = np.maximum((j + 0.5) * scale - 0.5, 0.0)
    i0 = np.minimum(np.floor(src), LINEAR_OUT - 1).astype(np.int64)
    i1 = np.minimum(i0 + 1, LINEAR_OUT - 1)
    w1 = src - i0
    w0 = 1.0 - w1
    ref = (w0 * b_np[i0] + w1 * b_np[i1]).reshape(1, C, T)

    assert out.shape == (B, C, T)
    assert np.allclose(np.asarray(out), np.broadcast_to(ref, (B, C, T)), atol=1e-5)

    print("KERNEL_OK")
</pallas_src>

<mosaic_0001>
module attributes {stable_mosaic.version = 11 : i64} {
  func.func @_interp_kernel(%arg0: i32, %arg1: memref<40x128xf32, #tpu.memory_space<vmem>>, %arg2: memref<1x128xi32, #tpu.memory_space<vmem>>, %arg3: memref<1x128xi32, #tpu.memory_space<vmem>>, %arg4: memref<1x128xf32, #tpu.memory_space<vmem>>, %arg5: memref<1x128xf32, #tpu.memory_space<vmem>>, %arg6: memref<1x128xf32, #tpu.memory_space<vmem>>) attributes {dimension_semantics = [#tpu.dimension_semantics<parallel>], iteration_bounds = array<i64: 1>, scalar_prefetch = 0 : i64, scratch_operands = 0 : i64, tpu.core_type = #tpu.core_type<tc>, window_params = [{pipeline_mode = #tpu.pipeline_mode<synchronous>, transform_indices = @transform_0, window_bounds = array<i64: 40, 128>}, {transform_indices = @transform_1, window_bounds = array<i64: 1, 128>}, {transform_indices = @transform_2, window_bounds = array<i64: 1, 128>}, {transform_indices = @transform_3, window_bounds = array<i64: 1, 128>}, {transform_indices = @transform_4, window_bounds = array<i64: 1, 128>}, {transform_indices = @transform_5, window_bounds = array<i64: 1, 128>}]} {
    %0 = tpu.iota {dimensions = array<i32: 0>} : vector<128x128xi32>
    %c0 = arith.constant 0 : index
    %c0_0 = arith.constant 0 : index
    %1 = vector.load %arg3[%c0, %c0_0] : memref<1x128xi32, #tpu.memory_space<vmem>>, vector<1x128xi32>
    %2 = vector.broadcast %1 : vector<1x128xi32> to vector<128x128xi32>
    %3 = arith.cmpi eq, %0, %2 : vector<128x128xi32>
    %4 = arith.extui %3 : vector<128x128xi1> to vector<128x128xi32>
    %5 = arith.sitofp %4 : vector<128x128xi32> to vector<128x128xf32>
    %c0_1 = arith.constant 0 : index
    %c0_2 = arith.constant 0 : index
    %6 = vector.load %arg1[%c0_1, %c0_2] : memref<40x128xf32, #tpu.memory_space<vmem>>, vector<40x128xf32>
    %cst = arith.constant dense<0.000000e+00> : vector<40x128xf32>
    %7 = tpu.matmul %6, %5, %cst {dimension_numbers = #tpu.dot_dimension_numbers<[1], [0], [0], [1], [0, 0, 1, 1], [], []>} : vector<40x128xf32>, vector<128x128xf32>, vector<40x128xf32> -> vector<40x128xf32>
    %8 = tpu.iota {dimensions = array<i32: 0>} : vector<40x128xi32>
    %c0_3 = arith.constant 0 : index
    %c0_4 = arith.constant 0 : index
    %9 = vector.load %arg2[%c0_3, %c0_4] : memref<1x128xi32, #tpu.memory_space<vmem>>, vector<1x128xi32>
    %10 = vector.broadcast %9 : vector<1x128xi32> to vector<40x128xi32>
    %11 = arith.cmpi eq, %8, %10 : vector<40x128xi32>
    %c0_5 = arith.constant 0 : index
    %c0_6 = arith.constant 0 : index
    %12 = vector.load %arg4[%c0_5, %c0_6] : memref<1x128xf32, #tpu.memory_space<vmem>>, vector<1x128xf32>
    %cst_7 = arith.constant 0.000000e+00 : f32
    %13 = vector.shape_cast %12 : vector<1x128xf32> to vector<1x128xf32>
    %14 = vector.broadcast %13 : vector<1x128xf32> to vector<40x128xf32>
    %15 = vector.broadcast %cst_7 : f32 to vector<40x128xf32>
    %16 = arith.select %11, %14, %15 : vector<40x128xi1>, vector<40x128xf32>
    %c0_8 = arith.constant 0 : index
    %c0_9 = arith.constant 0 : index
    %17 = vector.load %arg2[%c0_8, %c0_9] : memref<1x128xi32, #tpu.memory_space<vmem>>, vector<1x128xi32>
    %c20_i32 = arith.constant 20 : i32
    %18 = vector.broadcast %c20_i32 : i32 to vector<1x128xi32>
    %19 = arith.addi %17, %18 : vector<1x128xi32>
    %20 = vector.broadcast %19 : vector<1x128xi32> to vector<40x128xi32>
    %21 = arith.cmpi eq, %8, %20 : vector<40x128xi32>
    %c0_10 = arith.constant 0 : index
    %c0_11 = arith.constant 0 : index
    %22 = vector.load %arg5[%c0_10, %c0_11] : memref<1x128xf32, #tpu.memory_space<vmem>>, vector<1x128xf32>
    %cst_12 = arith.constant 0.000000e+00 : f32
    %23 = vector.shape_cast %22 : vector<1x128xf32> to vector<1x128xf32>
    %24 = vector.broadcast %23 : vector<1x128xf32> to vector<40x128xf32>
    %25 = vector.broadcast %cst_12 : f32 to vector<40x128xf32>
    %26 = arith.select %21, %24, %25 : vector<40x128xi1>, vector<40x128xf32>
    %27 = arith.addf %16, %26 : vector<40x128xf32>
    %28 = arith.mulf %27, %7 : vector<40x128xf32>
    %cst_13 = arith.constant dense<0.000000e+00> : vector<128xf32>
    %29 = vector.multi_reduction <add>, %28, %cst_13 [0] : vector<40x128xf32> to vector<128xf32>
    %30 = vector.shape_cast %29 : vector<128xf32> to vector<1x128xf32>
    %c0_14 = arith.constant 0 : index
    %c0_15 = arith.constant 0 : index
    %31 = vector.load %arg6[%c0_14, %c0_15] : memref<1x128xf32, #tpu.memory_space<vmem>>, vector<1x128xf32>
    tpu.vector_store %arg6[%c0_14, %c0_15], %30 {strides = array<i32>} : memref<1x128xf32, #tpu.memory_space<vmem>>, vector<1x128xf32>,
    return
  }
  func.func @transform_0(%arg0: i32) -> (i32, i32) {
    %c0_i32 = arith.constant 0 : i32
    %c0_i32_0 = arith.constant 0 : i32
    %c0_i32_1 = arith.constant 0 : i32
    return %c0_i32, %c0_i32_0 : i32, i32
  }
  func.func @transform_1(%arg0: i32) -> (i32, i32) {
    %c0_i32 = arith.constant 0 : i32
    %c0_i32_0 = arith.constant 0 : i32
    return %c0_i32, %arg0 : i32, i32
  }
  func.func @transform_2(%arg0: i32) -> (i32, i32) {
    %c0_i32 = arith.constant 0 : i32
    %c0_i32_0 = arith.constant 0 : i32
    return %c0_i32, %arg0 : i32, i32
  }
  func.func @transform_3(%arg0: i32) -> (i32, i32) {
    %c0_i32 = arith.constant 0 : i32
    %c0_i32_0 = arith.constant 0 : i32
    return %c0_i32, %arg0 : i32, i32
  }
  func.func @transform_4(%arg0: i32) -> (i32, i32) {
    %c0_i32 = arith.constant 0 : i32
    %c0_i32_0 = arith.constant 0 : i32
    return %c0_i32, %arg0 : i32, i32
  }
  func.func @transform_5(%arg0: i32) -> (i32, i32) {
    %c0_i32 = arith.constant 0 : i32
    %c0_i32_0 = arith.constant 0 : i32
    return %c0_i32, %arg0 : i32, i32
  }
}

</mosaic_0001>

<llo_original>
// kernel: tpu_custom_call.1
$region0: #{tpu_custom_call.1}
  #allocation0 [shape = 'u32[]', space=smem, size = 0x4, offset = 0x4, fixed_abs, tag = 'smem constant byte address 0x4 - core index']
  #allocation1 [shape = 'u32[144,128]{1,0:T(1,128)}', space=vmem, size = 0x12000, scoped, tag = 'internal scratch']
  %s0 = inlined_call_operand.hbm [shape: f32[40,128], index: 0, kind: input, shape index: {}]
  %s1 = inlined_call_operand.vmem [shape: s32[1,128], index: 1, kind: input, shape index: {}]
  %s2 = inlined_call_operand.vmem [shape: s32[1,128], index: 2, kind: input, shape index: {}]
  %s3 = inlined_call_operand.vmem [shape: f32[1,128], index: 3, kind: input, shape index: {}]
  %s4 = inlined_call_operand.vmem [shape: f32[1,128], index: 4, kind: input, shape index: {}]
  %s5 = inlined_call_operand.hbm [shape: f32[1,64], index: 5, kind: output, shape index: {}]
  %s6 = sld [smem:[#allocation0]]
  $region34: #{tpu_custom_call.1} parent=0
    _
  %s8 = ssub.s32 1, %s6
  %s9 = scalar_select 0, %s8, %s6
  $region1: #{tpu_custom_call.1} parent=0
    #allocation2 [shape = 'u8[20480]{0}', space=vmem, size = 0x5000, scoped, tag = 'input window, operand 0, single buffered']
    #allocation3 [shape = 's32[1]{0}', space=sflag, size = 0x4, scoped, tag = 'scoped memory for tpu_custom_call.1']
    #allocation4 [shape = 's32[1]{0}', space=sflag, size = 0x4, scoped, tag = 'scoped memory for tpu_custom_call.1']
    #allocation5 [shape = 'u8[512]{0}', space=vmem, size = 0x400, scoped, tag = 'output window, operand 0, single buffered']
    %10 = vsyncpa [#allocation3], 0
    %11 = vsyncpa [#allocation4], 0
    // Predicated region
    $region2: #{tpu_custom_call.1} parent=1 // pred_check
      _
    $region3: #{tpu_custom_call.1} parent=1 // pred_check_branch
      %13 = sbr.rel (0) target = $region5
    $region4: #{tpu_custom_call.1} parent=1 // pred_region
      %s15 = ssub.s32 640, 640
      %16 = vsyncadd [#allocation3], %s15
      %s17 = sshll.u32 [#allocation2], 4
      %s18 = int_to_ptr.vmem [resolvable:$true] %s17
      %23 = dma.hbm_to_vmem [thread:$0]  %s0, 640, %s18, [#allocation3], 128, 128, 8
    $region5: #{tpu_custom_call.1} parent=1 // pred_fallthru
      _
    // Predicated region
    $region6: #{tpu_custom_call.1} parent=1 // pred_check
      _
    $region7: #{tpu_custom_call.1} parent=1 // pred_check_branch
      %25 = sbr.rel (0) target = $region9
    $region8: #{tpu_custom_call.1} parent=1 // pred_region
      _
    $region9: #{tpu_custom_call.1} parent=1 // pred_fallthru
      _
    // Predicated region
    $region10: #{tpu_custom_call.1} parent=1 // pred_check
      _
    $region11: #{tpu_custom_call.1} parent=1 // pred_check_branch
      %27 = sbr.rel (0) target = $region13
    $region12: #{tpu_custom_call.1} parent=1 // pred_region
      _
    $region13: #{tpu_custom_call.1} parent=1 // pred_fallthru
      _
    // Predicated region
    $region14: #{tpu_custom_call.1} parent=1 // pred_check
      _
    $region15: #{tpu_custom_call.1} parent=1 // pred_check_branch
      %29 = sbr.rel (0) target = $region17
    $region16: #{tpu_custom_call.1} parent=1 // pred_region
      _
    $region17: #{tpu_custom_call.1} parent=1 // pred_fallthru
      _
    // Predicated region
    $region18: #{tpu_custom_call.1} parent=1 // pred_check
      _
    $region19: #{tpu_custom_call.1} parent=1 // pred_check_branch
      %31 = sbr.rel (0) target = $region21
    $region20: #{tpu_custom_call.1} parent=1 // pred_region
      _
    $region21: #{tpu_custom_call.1} parent=1 // pred_fallthru
      _
    // Predicated region
    $region22: #{tpu_custom_call.1} parent=1 // pred_check
      _
    $region23: #{tpu_custom_call.1} parent=1 // pred_check_branch
      %33 = sbr.rel (0) target = $region25
    $region24: #{tpu_custom_call.1} parent=1 // pred_region
      %34 = dma.done [#allocation3], 640
    $region25: #{tpu_custom_call.1} parent=1 // pred_fallthru
      _
    %v35 = vlaneseq
    %v36 = vshrl.u32 %v35, 7
    %v37 = vadd.s32 %v36, 8
    %v38 = vadd.s32 %v36, 16
    %v39 = vadd.s32 %v36, 24
    %v40 = vadd.s32 %v36, 32
    %v41 = vadd.s32 %v36, 40
    %v42 = vadd.s32 %v36, 48
    %v43 = vadd.s32 %v36, 56
    %v44 = vadd.s32 %v36, 64
    %v45 = vadd.s32 %v36, 72
    %v46 = vadd.s32 %v36, 80
    %v47 = vadd.s32 %v36, 88
    %v48 = vadd.s32 %v36, 96
    %v49 = vadd.s32 %v36, 104
    %v50 = vadd.s32 %v36, 112
    %v51 = vadd.s32 %v36, 120
    %v52 = vld [vmem:[%s2] sm:$0x1]
    %v53 = vlaneseq
    %v54 = vshrl.u32 %v53, 7
    %v55 = vsub.s32 0, %v54
    %v56 = vrot.slane %v52, %v55
    %vm57 = vcmp.eq.s32.totalorder %v36, %v56
    %vm58 = vcmp.eq.s32.totalorder %v37, %v56
    %vm59 = vcmp.eq.s32.totalorder %v38, %v56
    %vm60 = vcmp.eq.s32.totalorder %v39, %v56
    %vm61 = vcmp.eq.s32.totalorder %v40, %v56
    %vm62 = vcmp.eq.s32.totalorder %v41, %v56
    %vm63 = vcmp.eq.s32.totalorder %v42, %v56
    %vm64 = vcmp.eq.s32.totalorder %v43, %v56
    %vm65 = vcmp.eq.s32.totalorder %v44, %v56
    %vm66 = vcmp.eq.s32.totalorder %v45, %v56
    %vm67 = vcmp.eq.s32.totalorder %v46, %v56
    %vm68 = vcmp.eq.s32.totalorder %v47, %v56
    %vm69 = vcmp.eq.s32.totalorder %v48, %v56
    %vm70 = vcmp.eq.s32.totalorder %v49, %v56
    %vm71 = vcmp.eq.s32.totalorder %v50, %v56
    %vm72 = vcmp.eq.s32.totalorder %v51, %v56
    %v73 = vsel %vm57, 1, 0
    %v74 = vsel %vm58, 1, 0
    %v75 = vsel %vm59, 1, 0
    %v76 = vsel %vm60, 1, 0
    %v77 = vsel %vm61, 1, 0
    %v78 = vsel %vm62, 1, 0
    %v79 = vsel %vm63, 1, 0
    %v80 = vsel %vm64, 1, 0
    %v81 = vsel %vm65, 1, 0
    %v82 = vsel %vm66, 1, 0
    %v83 = vsel %vm67, 1, 0
    %v84 = vsel %vm68, 1, 0
    %v85 = vsel %vm69, 1, 0
    %v86 = vsel %vm70, 1, 0
    %v87 = vsel %vm71, 1, 0
    %v88 = vsel %vm72, 1, 0
    %v89 = vcvt.s32.f32 %v73
    %v90 = vcvt.s32.f32 %v74
    %v91 = vcvt.s32.f32 %v75
    %v92 = vcvt.s32.f32 %v76
    %v93 = vcvt.s32.f32 %v77
    %v94 = vcvt.s32.f32 %v78
    %v95 = vcvt.s32.f32 %v79
    %v96 = vcvt.s32.f32 %v80
    %v97 = vcvt.s32.f32 %v81
    %v98 = vcvt.s32.f32 %v82
    %v99 = vcvt.s32.f32 %v83
    %v100 = vcvt.s32.f32 %v84
    %v101 = vcvt.s32.f32 %v85
    %v102 = vcvt.s32.f32 %v86
    %v103 = vcvt.s32.f32 %v87
    %v104 = vcvt.s32.f32 %v88
    %v105 = vld [vmem:[#allocation2] sm:$0xff]
    %v106 = vld [vmem:[#allocation2 + $0x8] sm:$0xff]
    %v107 = vld [vmem:[#allocation2 + $0x10] sm:$0xff]
    %v108 = vld [vmem:[#allocation2 + $0x18] sm:$0xff]
    %v109 = vld [vmem:[#allocation2 + $0x20] sm:$0xff]
    %110 = vmatprep.subr.mxu0 0.0
    %111 = vmatpush1.msra.mxu0 %v89
    %112 = vmatprep.subr.mxu0 0.0
    %113 = vmatpush1.msra.mxu0 %v90
    %114 = vmatprep.subr.mxu0 0.0
    %115 = vmatpush1.msra.mxu0 %v91
    %116 = vmatprep.subr.mxu0 0.0
    %117 = vmatpush1.msra.mxu0 %v92
    %118 = vmatprep.subr.mxu0 0.0
    %119 = vmatpush1.msra.mxu0 %v93
    %120 = vmatprep.subr.mxu0 0.0
    %121 = vmatpush1.msra.mxu0 %v94
    %122 = vmatprep.subr.mxu0 0.0
    %123 = vmatpush1.msra.mxu0 %v95
    %124 = vmatprep.subr.mxu0 0.0
    %125 = vmatpush1.msra.mxu0 %v96
    %126 = vmatprep.subr.mxu0 0.0
    %127 = vmatpush1.msra.mxu0 %v97
    %128 = vmatprep.subr.mxu0 0.0
    %129 = vmatpush1.msra.mxu0 %v98
    %130 = vmatprep.subr.mxu0 0.0
    %131 = vmatpush1.msra.mxu0 %v99
    %132 = vmatprep.subr.mxu0 0.0
    %133 = vmatpush1.msra.mxu0 %v100
    %134 = vmatprep.subr.mxu0 0.0
    %135 = vmatpush1.msra.mxu0 %v101
    %136 = vmatprep.subr.mxu0 0.0
    %137 = vmatpush1.msra.mxu0 %v102
    %138 = vmatprep.subr.mxu0 0.0
    %139 = vmatpush1.msra.mxu0 %v103
    %140 = vmatprep.subr.mxu0 0.0
    %141 = vmatpush1.msra.mxu0 %v104
    %142 = vmatprep.subr.mxu0 0.0
    %143 = vmatpush1.msra.mxu0 0.0
    %144 = vmatprep.subr.mxu0 0.0
    %145 = vmatpush1.msra.mxu0 0.0
    %146 = vmatprep.subr.mxu0 0.0
    %147 = vmatpush1.msra.mxu0 0.0
    %148 = vmatprep.subr.mxu0 0.0
    %149 = vmatpush1.msra.mxu0 0.0
    %150 = vmatprep.subr.mxu0 0.0
    %151 = vmatpush1.msra.mxu0 0.0
    %152 = vmatprep.subr.mxu0 0.0
    %153 = vmatpush1.msra.mxu0 0.0
    %154 = vmatprep.subr.mxu0 0.0
    %155 = vmatpush1.msra.mxu0 0.0
    %156 = vmatprep.subr.mxu0 0.0
    %157 = vmatpush1.msra.mxu0 0.0
    %158 = vmatprep.subr.mxu0 0.0
    %159 = vmatpush1.msra.mxu0 0.0
    %160 = vmatprep.subr.mxu0 0.0
    %161 = vmatpush1.msra.mxu0 0.0
    %162 = vmatprep.subr.mxu0 0.0
    %163 = vmatpush1.msra.mxu0 0.0
    %164 = vmatprep.subr.mxu0 0.0
    %165 = vmatpush1.msra.mxu0 0.0
    %166 = vmatprep.subr.mxu0 0.0
    %167 = vmatpush1.msra.mxu0 0.0
    %168 = vmatprep.subr.mxu0 0.0
    %169 = vmatpush1.msra.mxu0 0.0
    %170 = vmatprep.subr.mxu0 0.0
    %171 = vmatpush1.msra.mxu0 0.0
    %172 = vmatprep.subr.mxu0 0.0
    %173 = vmatpush1.msra.mxu0 0.0
    %174 = vmatprep.mubr.f32.mxu0 0.0
    %175 = vmatmul.mubr.f32.gmra.mrb[0].mxu0 %v105
    %v176 = vpop.f32.mrb[0].mxu0
    %v177 = vadd.f32 0.0, %v176
    %v178 = vpop.f32.mrb[0].mxu0
    %179 = vmatprep.mubr.f32.mxu0 0.0
    %180 = vmatmul.mubr.f32.gmra.mrb[0].mxu0 %v106
    %v181 = vpop.f32.mrb[0].mxu0
    %v182 = vadd.f32 0.0, %v181
    %v183 = vpop.f32.mrb[0].mxu0
    %184 = vmatprep.mubr.f32.mxu0 0.0
    %185 = vmatmul.mubr.f32.gmra.mrb[0].mxu0 %v107
    %v186 = vpop.f32.mrb[0].mxu0
    %v187 = vadd.f32 0.0, %v186
    %v188 = vpop.f32.mrb[0].mxu0
    %189 = vmatprep.mubr.f32.mxu0 0.0
    %190 = vmatmul.mubr.f32.gmra.mrb[0].mxu0 %v108
    %v191 = vpop.f32.mrb[0].mxu0
    %v192 = vadd.f32 0.0, %v191
    %v193 = vpop.f32.mrb[0].mxu0
    %194 = vmatprep.mubr.f32.mxu0 0.0
    %195 = vmatmul.mubr.f32.gmra.mrb[0].mxu0 %v109
    %v196 = vpop.f32.mrb[0].mxu0
    %v197 = vadd.f32 0.0, %v196
    %v198 = vpop.f32.mrb[0].mxu0
    %199 = vdwg.mxu0
    %v200 = vld [vmem:[%s1] sm:$0x1]
    %v201 = vlaneseq
    %v202 = vshrl.u32 %v201, 7
    %v203 = vsub.s32 0, %v202
    %v204 = vrot.slane %v200, %v203
    %vm205 = vcmp.eq.s32.totalorder %v36, %v204
    %vm206 = vcmp.eq.s32.totalorder %v37, %v204
    %vm207 = vcmp.eq.s32.totalorder %v38, %v204
    %vm208 = vcmp.eq.s32.totalorder %v39, %v204
    %vm209 = vcmp.eq.s32.totalorder %v40, %v204
    %v210 = vld [vmem:[%s3] sm:$0x1]
    %v212 = vlaneseq
    %v213 = vshrl.u32 %v212, 7
    %v214 = vsub.s32 0, %v213
    %v215 = vrot.slane %v210, %v214
    %v217 = vsel %vm205, %v215, 0.0
    %v218 = vsel %vm206, %v215, 0.0
    %v219 = vsel %vm207, %v215, 0.0
    %v220 = vsel %vm208, %v215, 0.0
    %v221 = vsel %vm209, %v215, 0.0
    %v222 = vadd.s32 %v200, 20
    %v223 = vlaneseq
    %v224 = vshrl.u32 %v223, 7
    %v225 = vsub.s32 0, %v224
    %v226 = vrot.slane %v222, %v225
    %vm227 = vcmp.eq.s32.totalorder %v36, %v226
    %vm228 = vcmp.eq.s32.totalorder %v37, %v226
    %vm229 = vcmp.eq.s32.totalorder %v38, %v226
    %vm230 = vcmp.eq.s32.totalorder %v39, %v226
    %vm231 = vcmp.eq.s32.totalorder %v40, %v226
    %v232 = vld [vmem:[%s4] sm:$0x1]
    %v234 = vlaneseq
    %v235 = vshrl.u32 %v234, 7
    %v236 = vsub.s32 0, %v235
    %v237 = vrot.slane %v232, %v236
    %v239 = vsel %vm227, %v237, 0.0
    %v240 = vsel %vm228, %v237, 0.0
    %v241 = vsel %vm229, %v237, 0.0
    %v242 = vsel %vm230, %v237, 0.0
    %v243 = vsel %vm231, %v237, 0.0
    %v244 = vadd.f32 %v217, %v239
    %v245 = vadd.f32 %v218, %v240
    %v246 = vadd.f32 %v219, %v241
    %v247 = vadd.f32 %v220, %v242
    %v248 = vadd.f32 %v221, %v243
    %v249 = vmul.f32 %v244, %v177
    %v250 = vmul.f32 %v245, %v182
    %v251 = vmul.f32 %v246, %v187
    %v252 = vmul.f32 %v247, %v192
    %v253 = vmul.f32 %v248, %v197
    %v254 = vadd.f32 %v249, %v250
    %v255 = vadd.f32 %v254, %v251
    %v256 = vadd.f32 %v255, %v252
    %v257 = vadd.f32 %v256, %v253
    %v258 = vrot.slane %v257, 4
    %v259 = vadd.f32 %v257, %v258
    %v260 = vrot.slane %v259, 2
    %v261 = vadd.f32 %v259, %v260
    %v262 = vrot.slane %v261, 1
    %v263 = vadd.f32 %v261, %v262
    %264 = vst [vmem:[#allocation5] sm:$0x1] %v263
    // Predicated region
    $region26: #{tpu_custom_call.1} parent=1 // pred_check
      _
    $region27: #{tpu_custom_call.1} parent=1 // pred_check_branch
      %266 = sbr.rel (0) target = $region29
    $region28: #{tpu_custom_call.1} parent=1 // pred_region
      %s268 = ssub.s32 16, 16
      %269 = vsyncadd [#allocation4], %s268
      %s271 = sshll.u32 [#allocation5], 4
      %s272 = int_to_ptr.vmem [resolvable:$true] %s271
      %274 = dma.vmem_to_hbm [thread:$0]  %s272, 16, %s5, [#allocation4]
    $region29: #{tpu_custom_call.1} parent=1 // pred_fallthru
      _
    // Predicated region
    $region30: #{tpu_custom_call.1} parent=1 // pred_check
      _
    $region31: #{tpu_custom_call.1} parent=1 // pred_check_branch
      %276 = sbr.rel (0) target = $region33
    $region32: #{tpu_custom_call.1} parent=1 // pred_region
      %277 = dma.done [#allocation4], 16
    $region33: #{tpu_custom_call.1} parent=1 // pred_fallthru
      _
    %278 = vsyncpa [#allocation3], 1
    %279 = vsyncpa [#allocation4], 1

</llo_original>
